<compile_context>
chip_gen: v7x
topology: tpu7x:2x2x1
jax: 0.10.0
libtpu: 0.0.40
codegen_flags: <defaults>
</compile_context>

<pallas_src>
import functools

import jax
import jax.numpy as jnp
from jax.experimental import pallas as pl
from jax.experimental.pallas import tpu as pltpu

CURRENT_DIFFUSION_STEPS = 10.0


def _round_up(n, m):
    return ((n + m - 1) // m) * m


def _mlp_kernel(x_ref, t_ref, w1x_ref, w1t_ref, b1_ref,
                w2_ref, b2_ref, w3_ref, b3_ref, o_ref):
    x = x_ref[...]                      # (TB, D)
    t = t_ref[...]                      # (TB, 1)

    # fc1: x @ w1x on the MXU, time contribution as a VPU broadcast-FMA.
    h1 = jnp.dot(x, w1x_ref[...], preferred_element_type=jnp.float32)
    h1 = h1 + t * w1t_ref[...] + b1_ref[...]
    h1 = jnp.maximum(h1, 0.0)           # ReLU  (dropout: identity in eval)

    # fc2
    h2 = jnp.dot(h1, w2_ref[...], preferred_element_type=jnp.float32) + b2_ref[...]
    h2 = jnp.maximum(h2, 0.0)           # ReLU  (dropout: identity in eval)

    # fc3
    out = jnp.dot(h2, w3_ref[...], preferred_element_type=jnp.float32) + b3_ref[...]
    o_ref[...] = out.astype(o_ref.dtype)


@functools.partial(jax.jit, static_argnames=("block_b",))
def diffusion_mlp_v3_forward(x, t, params, *, block_b=256):
    """x: (B, D) float32, t: (B,) int/float timestep. Returns (B, D)."""
    w1, b1, w2, b2, w3, b3 = params
    B, D = x.shape
    H2 = w1.shape[1]
    out_dim = w3.shape[1]

    # Split fc1 weight: rows [0:D] multiply x, row [D] multiplies t_norm.
    w1x = w1[:D, :]                 # (D, 2H)
    w1t = w1[D:, :]                 # (1, 2H)

    # _prepare_input's time normalization (concat is folded into the kernel).
    t_norm = (t.astype(jnp.float32) / CURRENT_DIFFUSION_STEPS)[:, None]  # (B, 1)

    # Batch tiling: multiple of 8 (f32 sublane), capped at block_b.
    tb = min(block_b, _round_up(B, 8))
    b_pad = _round_up(B, tb)
    if b_pad != B:
        x = jnp.pad(x, ((0, b_pad - B), (0, 0)))
        t_norm = jnp.pad(t_norm, ((0, b_pad - B), (0, 0)))
    grid = (b_pad // tb,)

    # Activations tiled over batch; weights/biases VMEM-resident (constant maps).
    act = lambda n: pl.BlockSpec((tb, n), lambda i: (i, 0))
    res = lambda shape: pl.BlockSpec(shape, lambda i: (0, 0))

    flops = 2 * b_pad * (D * H2 + H2 * H2 + H2 * out_dim) + b_pad * H2
    bytes_accessed = 4 * (
        b_pad * D + b_pad                       # x, t_norm
        + D * H2 + H2 + H2 * H2 + H2            # w1x/w1t/b1, w2/b2 (approx)
        + H2 * H2 + H2 * out_dim + out_dim      # w3/b3
        + b_pad * out_dim                       # output
    )

    out = pl.pallas_call(
        _mlp_kernel,
        out_shape=jax.ShapeDtypeStruct((b_pad, out_dim), x.dtype),
        grid=grid,
        in_specs=[
            act(D),                 # x tile
            act(1),                 # t_norm tile
            res(w1x.shape),         # w1x
            res(w1t.shape),         # w1t
            res(b1.shape),          # b1
            res(w2.shape),          # w2
            res(b2.shape),          # b2
            res(w3.shape),          # w3
            res(b3.shape),          # b3
        ],
        out_specs=act(out_dim),
        compiler_params=pltpu.CompilerParams(
            dimension_semantics=("parallel",),
        ),
        cost_estimate=pl.CostEstimate(
            flops=flops, transcendentals=0, bytes_accessed=bytes_accessed),
    )(x, t_norm, w1x, w1t, b1, w2, b2, w3, b3)

    return out[:B]


def init_params(key, input_dim, hidden_dim):
    """Deterministic parameter init matching nn.Linear shapes (stored transposed)."""
    h2 = hidden_dim * 2
    ks = jax.random.split(key, 6)

    def linear(kw, kb, fan_in, fan_out):
        bound = 1.0 / jnp.sqrt(fan_in)
        w = jax.random.uniform(kw, (fan_in, fan_out), jnp.float32, -bound, bound)
        b = jax.random.uniform(kb, (1, fan_out), jnp.float32, -bound, bound)
        return w, b

    w1, b1 = linear(ks[0], ks[1], input_dim + 1, h2)
    w2, b2 = linear(ks[2], ks[3], h2, h2)
    w3, b3 = linear(ks[4], ks[5], h2, input_dim)
    return (w1, b1, w2, b2, w3, b3)


def reference_forward(x, t, params):
    """Pure-JAX reference for correctness check (matches the PyTorch forward)."""
    w1, b1, w2, b2, w3, b3 = params
    t_norm = (t.astype(jnp.float32) / CURRENT_DIFFUSION_STEPS)[:, None]
    h = jnp.concatenate([x, t_norm], axis=1)
    h = jnp.maximum(h @ w1 + b1, 0.0)
    h = jnp.maximum(h @ w2 + b2, 0.0)
    return h @ w3 + b3


if __name__ == "__main__":
    batch = 8
    input_dim = 16
    hidden_dim = 32

    key = jax.random.PRNGKey(0)
    kx, kt, kp = jax.random.split(key, 3)

    x = jax.random.normal(kx, (batch, input_dim), jnp.float32)
    t = jax.random.randint(kt, (batch,), 0, int(CURRENT_DIFFUSION_STEPS), jnp.int32)
    params = init_params(kp, input_dim, hidden_dim)

    out = diffusion_mlp_v3_forward(x, t, params)
    out = jax.block_until_ready(out)

    ref = reference_forward(x, t, params)
    assert out.shape == (batch, input_dim)
    assert jnp.allclose(out, ref, atol=1e-5, rtol=1e-5)

    print("KERNEL_OK")
</pallas_src>

<mosaic_0001>
module attributes {stable_mosaic.version = 11 : i64} {
  func.func @_mlp_kernel(%arg0: i32, %arg1: memref<8x16xf32, #tpu.memory_space<vmem>>, %arg2: memref<8x1xf32, #tpu.memory_space<vmem>>, %arg3: memref<16x64xf32, #tpu.memory_space<vmem>>, %arg4: memref<1x64xf32, #tpu.memory_space<vmem>>, %arg5: memref<1x64xf32, #tpu.memory_space<vmem>>, %arg6: memref<64x64xf32, #tpu.memory_space<vmem>>, %arg7: memref<1x64xf32, #tpu.memory_space<vmem>>, %arg8: memref<64x16xf32, #tpu.memory_space<vmem>>, %arg9: memref<1x16xf32, #tpu.memory_space<vmem>>, %arg10: memref<8x16xf32, #tpu.memory_space<vmem>>) attributes {dimension_semantics = [#tpu.dimension_semantics<parallel>], iteration_bounds = array<i64: 1>, scalar_prefetch = 0 : i64, scratch_operands = 0 : i64, tpu.core_type = #tpu.core_type<tc>, window_params = [{transform_indices = @transform_0, window_bounds = array<i64: 8, 16>}, {transform_indices = @transform_1, window_bounds = array<i64: 8, 1>}, {pipeline_mode = #tpu.pipeline_mode<synchronous>, transform_indices = @transform_2, window_bounds = array<i64: 16, 64>}, {pipeline_mode = #tpu.pipeline_mode<synchronous>, transform_indices = @transform_3, window_bounds = array<i64: 1, 64>}, {pipeline_mode = #tpu.pipeline_mode<synchronous>, transform_indices = @transform_4, window_bounds = array<i64: 1, 64>}, {pipeline_mode = #tpu.pipeline_mode<synchronous>, transform_indices = @transform_5, window_bounds = array<i64: 64, 64>}, {pipeline_mode = #tpu.pipeline_mode<synchronous>, transform_indices = @transform_6, window_bounds = array<i64: 1, 64>}, {pipeline_mode = #tpu.pipeline_mode<synchronous>, transform_indices = @transform_7, window_bounds = array<i64: 64, 16>}, {pipeline_mode = #tpu.pipeline_mode<synchronous>, transform_indices = @transform_8, window_bounds = array<i64: 1, 16>}, {transform_indices = @transform_9, window_bounds = array<i64: 8, 16>}]} {
    %c0 = arith.constant 0 : index
    %c0_0 = arith.constant 0 : index
    %0 = vector.load %arg1[%c0, %c0_0] : memref<8x16xf32, #tpu.memory_space<vmem>>, vector<8x16xf32>
    %c0_1 = arith.constant 0 : index
    %c0_2 = arith.constant 0 : index
    %1 = vector.load %arg2[%c0_1, %c0_2] : memref<8x1xf32, #tpu.memory_space<vmem>>, vector<8x1xf32>
    %c0_3 = arith.constant 0 : index
    %c0_4 = arith.constant 0 : index
    %2 = vector.load %arg3[%c0_3, %c0_4] : memref<16x64xf32, #tpu.memory_space<vmem>>, vector<16x64xf32>
    %cst = arith.constant dense<0.000000e+00> : vector<8x64xf32>
    %3 = tpu.matmul %0, %2, %cst {dimension_numbers = #tpu.dot_dimension_numbers<[1], [0], [0], [1], [0, 0, 1, 1], [], []>} : vector<8x16xf32>, vector<16x64xf32>, vector<8x64xf32> -> vector<8x64xf32>
    %c0_5 = arith.constant 0 : index
    %c0_6 = arith.constant 0 : index
    %4 = vector.load %arg4[%c0_5, %c0_6] : memref<1x64xf32, #tpu.memory_space<vmem>>, vector<1x64xf32>
    %5 = vector.broadcast %1 : vector<8x1xf32> to vector<8x64xf32>
    %6 = vector.broadcast %4 : vector<1x64xf32> to vector<8x64xf32>
    %7 = arith.mulf %5, %6 : vector<8x64xf32>
    %8 = arith.addf %3, %7 : vector<8x64xf32>
    %c0_7 = arith.constant 0 : index
    %c0_8 = arith.constant 0 : index
    %9 = vector.load %arg5[%c0_7, %c0_8] : memref<1x64xf32, #tpu.memory_space<vmem>>, vector<1x64xf32>
    %10 = vector.broadcast %9 : vector<1x64xf32> to vector<8x64xf32>
    %11 = arith.addf %8, %10 : vector<8x64xf32>
    %cst_9 = arith.constant 0.000000e+00 : f32
    %12 = vector.broadcast %cst_9 : f32 to vector<8x64xf32>
    %13 = arith.maximumf %11, %12 : vector<8x64xf32>
    %c0_10 = arith.constant 0 : index
    %c0_11 = arith.constant 0 : index
    %14 = vector.load %arg6[%c0_10, %c0_11] : memref<64x64xf32, #tpu.memory_space<vmem>>, vector<64x64xf32>
    %cst_12 = arith.constant dense<0.000000e+00> : vector<8x64xf32>
    %15 = tpu.matmul %13, %14, %cst_12 {dimension_numbers = #tpu.dot_dimension_numbers<[1], [0], [0], [1], [0, 0, 1, 1], [], []>} : vector<8x64xf32>, vector<64x64xf32>, vector<8x64xf32> -> vector<8x64xf32>
    %c0_13 = arith.constant 0 : index
    %c0_14 = arith.constant 0 : index
    %16 = vector.load %arg7[%c0_13, %c0_14] : memref<1x64xf32, #tpu.memory_space<vmem>>, vector<1x64xf32>
    %17 = vector.broadcast %16 : vector<1x64xf32> to vector<8x64xf32>
    %18 = arith.addf %15, %17 : vector<8x64xf32>
    %cst_15 = arith.constant 0.000000e+00 : f32
    %19 = vector.broadcast %cst_15 : f32 to vector<8x64xf32>
    %20 = arith.maximumf %18, %19 : vector<8x64xf32>
    %c0_16 = arith.constant 0 : index
    %c0_17 = arith.constant 0 : index
    %21 = vector.load %arg8[%c0_16, %c0_17] : memref<64x16xf32, #tpu.memory_space<vmem>>, vector<64x16xf32>
    %cst_18 = arith.constant dense<0.000000e+00> : vector<8x16xf32>
    %22 = tpu.matmul %20, %21, %cst_18 {dimension_numbers = #tpu.dot_dimension_numbers<[1], [0], [0], [1], [0, 0, 1, 1], [], []>} : vector<8x64xf32>, vector<64x16xf32>, vector<8x16xf32> -> vector<8x16xf32>
    %c0_19 = arith.constant 0 : index
    %c0_20 = arith.constant 0 : index
    %23 = vector.load %arg9[%c0_19, %c0_20] : memref<1x16xf32, #tpu.memory_space<vmem>>, vector<1x16xf32>
    %24 = vector.broadcast %23 : vector<1x16xf32> to vector<8x16xf32>
    %25 = arith.addf %22, %24 : vector<8x16xf32>
    %c0_21 = arith.constant 0 : index
    %c0_22 = arith.constant 0 : index
    %26 = vector.load %arg10[%c0_21, %c0_22] : memref<8x16xf32, #tpu.memory_space<vmem>>, vector<8x16xf32>
    tpu.vector_store %arg10[%c0_21, %c0_22], %25 {strides = array<i32>} : memref<8x16xf32, #tpu.memory_space<vmem>>, vector<8x16xf32>,
    return
  }
  func.func @transform_0(%arg0: i32) -> (i32, i32) {
    %c0_i32 = arith.constant 0 : i32
    %c0_i32_0 = arith.constant 0 : i32
    return %arg0, %c0_i32 : i32, i32
  }
  func.func @transform_1(%arg0: i32) -> (i32, i32) {
    %c0_i32 = arith.constant 0 : i32
    %c0_i32_0 = arith.constant 0 : i32
    return %arg0, %c0_i32 : i32, i32
  }
  func.func @transform_2(%arg0: i32) -> (i32, i32) {
    %c0_i32 = arith.constant 0 : i32
    %c0_i32_0 = arith.constant 0 : i32
    %c0_i32_1 = arith.constant 0 : i32
    return %c0_i32, %c0_i32_0 : i32, i32
  }
  func.func @transform_3(%arg0: i32) -> (i32, i32) {
    %c0_i32 = arith.constant 0 : i32
    %c0_i32_0 = arith.constant 0 : i32
    %c0_i32_1 = arith.constant 0 : i32
    return %c0_i32, %c0_i32_0 : i32, i32
  }
  func.func @transform_4(%arg0: i32) -> (i32, i32) {
    %c0_i32 = arith.constant 0 : i32
    %c0_i32_0 = arith.constant 0 : i32
    %c0_i32_1 = arith.constant 0 : i32
    return %c0_i32, %c0_i32_0 : i32, i32
  }
  func.func @transform_5(%arg0: i32) -> (i32, i32) {
    %c0_i32 = arith.constant 0 : i32
    %c0_i32_0 = arith.constant 0 : i32
    %c0_i32_1 = arith.constant 0 : i32
    return %c0_i32, %c0_i32_0 : i32, i32
  }
  func.func @transform_6(%arg0: i32) -> (i32, i32) {
    %c0_i32 = arith.constant 0 : i32
    %c0_i32_0 = arith.constant 0 : i32
    %c0_i32_1 = arith.constant 0 : i32
    return %c0_i32, %c0_i32_0 : i32, i32
  }
  func.func @transform_7(%arg0: i32) -> (i32, i32) {
    %c0_i32 = arith.constant 0 : i32
    %c0_i32_0 = arith.constant 0 : i32
    %c0_i32_1 = arith.constant 0 : i32
    return %c0_i32, %c0_i32_0 : i32, i32
  }
  func.func @transform_8(%arg0: i32) -> (i32, i32) {
    %c0_i32 = arith.constant 0 : i32
    %c0_i32_0 = arith.constant 0 : i32
    %c0_i32_1 = arith.constant 0 : i32
    return %c0_i32, %c0_i32_0 : i32, i32
  }
  func.func @transform_9(%arg0: i32) -> (i32, i32) {
    %c0_i32 = arith.constant 0 : i32
    %c0_i32_0 = arith.constant 0 : i32
    return %arg0, %c0_i32 : i32, i32
  }
}

</mosaic_0001>

<llo_original>
// kernel: diffusion_mlp_v3_forward.1
$region0: #{diffusion_mlp_v3_forward.1}
  #allocation0 [shape = 'u32[]', space=smem, size = 0x4, offset = 0x4, fixed_abs, tag = 'smem constant byte address 0x4 - core index']
  #allocation1 [shape = 'u32[144,128]{1,0:T(1,128)}', space=vmem, size = 0x12000, scoped, tag = 'internal scratch']
  %s0 = inlined_call_operand.vmem [shape: f32[8,16], index: 0, kind: input, shape index: {}]
  %s1 = inlined_call_operand.vmem [shape: f32[8,1], index: 1, kind: input, shape index: {}]
  %s2 = inlined_call_operand.vmem [shape: f32[16,64], index: 2, kind: input, shape index: {}]
  %s3 = inlined_call_operand.vmem [shape: f32[1,64], index: 3, kind: input, shape index: {}]
  %s4 = inlined_call_operand.vmem [shape: f32[1,64], index: 4, kind: input, shape index: {}]
  %s5 = inlined_call_operand.vmem [shape: f32[64,64], index: 5, kind: input, shape index: {}]
  %s6 = inlined_call_operand.vmem [shape: f32[1,64], index: 6, kind: input, shape index: {}]
  %s7 = inlined_call_operand.vmem [shape: f32[64,16], index: 7, kind: input, shape index: {}]
  %s8 = inlined_call_operand.vmem [shape: f32[1,16], index: 8, kind: input, shape index: {}]
  %s9 = inlined_call_operand.hbm [shape: f32[8,16], index: 9, kind: output, shape index: {}]
  %s10 = sld [smem:[#allocation0]]
  $region46: #{diffusion_mlp_v3_forward.1} parent=0
    _
  %s12 = ssub.s32 1, %s10
  %s13 = scalar_select 0, %s12, %s10
  $region1: #{diffusion_mlp_v3_forward.1} parent=0
    #allocation2 [shape = 'u8[4096]{0}', space=vmem, size = 0x1000, scoped, tag = 'output window, operand 0, single buffered']
    #allocation3 [shape = 's32[1]{0}', space=sflag, size = 0x4, scoped, tag = 'scoped memory for diffusion_mlp_v3_forward.1']
    %14 = vsyncpa [#allocation3], 0
    // Predicated region
    $region2: #{diffusion_mlp_v3_forward.1} parent=1 // pred_check
      _
    $region3: #{diffusion_mlp_v3_forward.1} parent=1 // pred_check_branch
      %16 = sbr.rel (0) target = $region5
    $region4: #{diffusion_mlp_v3_forward.1} parent=1 // pred_region
      _
    $region5: #{diffusion_mlp_v3_forward.1} parent=1 // pred_fallthru
      _
    // Predicated region
    $region6: #{diffusion_mlp_v3_forward.1} parent=1 // pred_check
      _
    $region7: #{diffusion_mlp_v3_forward.1} parent=1 // pred_check_branch
      %18 = sbr.rel (0) target = $region9
    $region8: #{diffusion_mlp_v3_forward.1} parent=1 // pred_region
      _
    $region9: #{diffusion_mlp_v3_forward.1} parent=1 // pred_fallthru
      _
    // Predicated region
    $region10: #{diffusion_mlp_v3_forward.1} parent=1 // pred_check
      _
    $region11: #{diffusion_mlp_v3_forward.1} parent=1 // pred_check_branch
      %20 = sbr.rel (0) target = $region13
    $region12: #{diffusion_mlp_v3_forward.1} parent=1 // pred_region
      _
    $region13: #{diffusion_mlp_v3_forward.1} parent=1 // pred_fallthru
      _
    // Predicated region
    $region14: #{diffusion_mlp_v3_forward.1} parent=1 // pred_check
      _
    $region15: #{diffusion_mlp_v3_forward.1} parent=1 // pred_check_branch
      %22 = sbr.rel (0) target = $region17
    $region16: #{diffusion_mlp_v3_forward.1} parent=1 // pred_region
      _
    $region17: #{diffusion_mlp_v3_forward.1} parent=1 // pred_fallthru
      _
    // Predicated region
    $region18: #{diffusion_mlp_v3_forward.1} parent=1 // pred_check
      _
    $region19: #{diffusion_mlp_v3_forward.1} parent=1 // pred_check_branch
      %24 = sbr.rel (0) target = $region21
    $region20: #{diffusion_mlp_v3_forward.1} parent=1 // pred_region
      _
    $region21: #{diffusion_mlp_v3_forward.1} parent=1 // pred_fallthru
      _
    // Predicated region
    $region22: #{diffusion_mlp_v3_forward.1} parent=1 // pred_check
      _
    $region23: #{diffusion_mlp_v3_forward.1} parent=1 // pred_check_branch
      %26 = sbr.rel (0) target = $region25
    $region24: #{diffusion_mlp_v3_forward.1} parent=1 // pred_region
      _
    $region25: #{diffusion_mlp_v3_forward.1} parent=1 // pred_fallthru
      _
    // Predicated region
    $region26: #{diffusion_mlp_v3_forward.1} parent=1 // pred_check
      _
    $region27: #{diffusion_mlp_v3_forward.1} parent=1 // pred_check_branch
      %28 = sbr.rel (0) target = $region29
    $region28: #{diffusion_mlp_v3_forward.1} parent=1 // pred_region
      _
    $region29: #{diffusion_mlp_v3_forward.1} parent=1 // pred_fallthru
      _
    // Predicated region
    $region30: #{diffusion_mlp_v3_forward.1} parent=1 // pred_check
      _
    $region31: #{diffusion_mlp_v3_forward.1} parent=1 // pred_check_branch
      %30 = sbr.rel (0) target = $region33
    $region32: #{diffusion_mlp_v3_forward.1} parent=1 // pred_region
      _
    $region33: #{diffusion_mlp_v3_forward.1} parent=1 // pred_fallthru
      _
    // Predicated region
    $region34: #{diffusion_mlp_v3_forward.1} parent=1 // pred_check
      _
    $region35: #{diffusion_mlp_v3_forward.1} parent=1 // pred_check_branch
      %32 = sbr.rel (0) target = $region37
    $region36: #{diffusion_mlp_v3_forward.1} parent=1 // pred_region
      _
    $region37: #{diffusion_mlp_v3_forward.1} parent=1 // pred_fallthru
      _
    %v33 = vld [vmem:[%s0] sm:$0xff]
    %v34 = vld [vmem:[%s1] sm:$0xff]
    %v35 = vld [vmem:[%s2] sm:$0xff]
    %v36 = vld [vmem:[%s2 + $0x8] sm:$0xff]
    %v37 = vld [vmem:[%s3] sm:$0x1]
    %39 = vset.pattern.permute.xlu0 0
    %40 = vperm.xlu0 %39, %v34
    %v41 = vpop.permute.xlu0 %40
    %v44 = vlaneseq
    %v45 = vshrl.u32 %v44, 7
    %v46 = vsub.s32 0, %v45
    %v47 = vrot.slane %v37, %v46
    %v49 = vmul.f32 %v41, %v47
    %vm50 = vcmask 130048
    %v52 = vsel %vm50, %v33, 0
    %54 = vmatprep.subr.mxu0 0.0
    %55 = vmatpush1.msra.mxu0 %v35
    %56 = vmatprep.subr.mxu0 0.0
    %57 = vmatpush1.msra.mxu0 %v36
    %58 = vmatprep.subr.mxu0 0.0
    %59 = vmatpush1.msra.mxu0 0.0
    %60 = vmatprep.subr.mxu0 0.0
    %61 = vmatpush1.msra.mxu0 0.0
    %62 = vmatprep.subr.mxu0 0.0
    %63 = vmatpush1.msra.mxu0 0.0
    %64 = vmatprep.subr.mxu0 0.0
    %65 = vmatpush1.msra.mxu0 0.0
    %66 = vmatprep.subr.mxu0 0.0
    %67 = vmatpush1.msra.mxu0 0.0
    %68 = vmatprep.subr.mxu0 0.0
    %69 = vmatpush1.msra.mxu0 0.0
    %70 = vmatprep.subr.mxu0 0.0
    %71 = vmatpush1.msra.mxu0 0.0
    %72 = vmatprep.subr.mxu0 0.0
    %73 = vmatpush1.msra.mxu0 0.0
    %74 = vmatprep.subr.mxu0 0.0
    %75 = vmatpush1.msra.mxu0 0.0
    %76 = vmatprep.subr.mxu0 0.0
    %77 = vmatpush1.msra.mxu0 0.0
    %78 = vmatprep.subr.mxu0 0.0
    %79 = vmatpush1.msra.mxu0 0.0
    %80 = vmatprep.subr.mxu0 0.0
    %81 = vmatpush1.msra.mxu0 0.0
    %82 = vmatprep.subr.mxu0 0.0
    %83 = vmatpush1.msra.mxu0 0.0
    %84 = vmatprep.subr.mxu0 0.0
    %85 = vmatpush1.msra.mxu0 0.0
    %86 = vmatprep.subr.mxu0 0.0
    %87 = vmatpush1.msra.mxu0 0.0
    %88 = vmatprep.subr.mxu0 0.0
    %89 = vmatpush1.msra.mxu0 0.0
    %90 = vmatprep.subr.mxu0 0.0
    %91 = vmatpush1.msra.mxu0 0.0
    %92 = vmatprep.subr.mxu0 0.0
    %93 = vmatpush1.msra.mxu0 0.0
    %94 = vmatprep.subr.mxu0 0.0
    %95 = vmatpush1.msra.mxu0 0.0
    %96 = vmatprep.subr.mxu0 0.0
    %97 = vmatpush1.msra.mxu0 0.0
    %98 = vmatprep.subr.mxu0 0.0
    %99 = vmatpush1.msra.mxu0 0.0
    %100 = vmatprep.subr.mxu0 0.0
    %101 = vmatpush1.msra.mxu0 0.0
    %102 = vmatprep.subr.mxu0 0.0
    %103 = vmatpush1.msra.mxu0 0.0
    %104 = vmatprep.subr.mxu0 0.0
    %105 = vmatpush1.msra.mxu0 0.0
    %106 = vmatprep.subr.mxu0 0.0
    %107 = vmatpush1.msra.mxu0 0.0
    %108 = vmatprep.subr.mxu0 0.0
    %109 = vmatpush1.msra.mxu0 0.0
    %110 = vmatprep.subr.mxu0 0.0
    %111 = vmatpush1.msra.mxu0 0.0
    %112 = vmatprep.subr.mxu0 0.0
    %113 = vmatpush1.msra.mxu0 0.0
    %114 = vmatprep.subr.mxu0 0.0
    %115 = vmatpush1.msra.mxu0 0.0
    %116 = vmatprep.subr.mxu0 0.0
    %117 = vmatpush1.msra.mxu0 0.0
    %118 = vmatprep.mubr.f32.mxu0 0.0
    %119 = vmatmul.mubr.f32.gmra.mrb[0].mxu0 %v52
    %v120 = vpop.f32.mrb[0].mxu0
    %v121 = vadd.f32 %v49, %v120
    %v122 = vpop.f32.mrb[0].mxu0
    %123 = vdwg.mxu0
    %v124 = vld [vmem:[%s4] sm:$0x1]
    %v126 = vlaneseq
    %v127 = vshrl.u32 %v126, 7
    %v128 = vsub.s32 0, %v127
    %v129 = vrot.slane %v124, %v128
    %v131 = vadd.f32 %v121, %v129
    %v132 = vmax.f32 %v131, 0.0
    %v133 = vld [vmem:[%s5] sm:$0xff]
    %v134 = vld [vmem:[%s5 + $0x8] sm:$0xff]
    %v135 = vld [vmem:[%s5 + $0x10] sm:$0xff]
    %v136 = vld [vmem:[%s5 + $0x18] sm:$0xff]
    %v137 = vld [vmem:[%s5 + $0x20] sm:$0xff]
    %v138 = vld [vmem:[%s5 + $0x28] sm:$0xff]
    %v139 = vld [vmem:[%s5 + $0x30] sm:$0xff]
    %v140 = vld [vmem:[%s5 + $0x38] sm:$0xff]
    %v141 = vld [vmem:[%s6] sm:$0x1]
    %v143 = vlaneseq
    %v144 = vshrl.u32 %v143, 7
    %v145 = vsub.s32 0, %v144
    %v146 = vrot.slane %v141, %v145
    %vm148 = vcmask 523264
    %v150 = vsel %vm148, %v132, 0
    %152 = vmatprep.subr.mxu0 0.0
    %153 = vmatpush1.msra.mxu0 %v133
    %154 = vmatprep.subr.mxu0 0.0
    %155 = vmatpush1.msra.mxu0 %v134
    %156 = vmatprep.subr.mxu0 0.0
    %157 = vmatpush1.msra.mxu0 %v135
    %158 = vmatprep.subr.mxu0 0.0
    %159 = vmatpush1.msra.mxu0 %v136
    %160 = vmatprep.subr.mxu0 0.0
    %161 = vmatpush1.msra.mxu0 %v137
    %162 = vmatprep.subr.mxu0 0.0
    %163 = vmatpush1.msra.mxu0 %v138
    %164 = vmatprep.subr.mxu0 0.0
    %165 = vmatpush1.msra.mxu0 %v139
    %166 = vmatprep.subr.mxu0 0.0
    %167 = vmatpush1.msra.mxu0 %v140
    %168 = vmatprep.subr.mxu0 0.0
    %169 = vmatpush1.msra.mxu0 0.0
    %170 = vmatprep.subr.mxu0 0.0
    %171 = vmatpush1.msra.mxu0 0.0
    %172 = vmatprep.subr.mxu0 0.0
    %173 = vmatpush1.msra.mxu0 0.0
    %174 = vmatprep.subr.mxu0 0.0
    %175 = vmatpush1.msra.mxu0 0.0
    %176 = vmatprep.subr.mxu0 0.0
    %177 = vmatpush1.msra.mxu0 0.0
    %178 = vmatprep.subr.mxu0 0.0
    %179 = vmatpush1.msra.mxu0 0.0
    %180 = vmatprep.subr.mxu0 0.0
    %181 = vmatpush1.msra.mxu0 0.0
    %182 = vmatprep.subr.mxu0 0.0
    %183 = vmatpush1.msra.mxu0 0.0
    %184 = vmatprep.subr.mxu0 0.0
    %185 = vmatpush1.msra.mxu0 0.0
    %186 = vmatprep.subr.mxu0 0.0
    %187 = vmatpush1.msra.mxu0 0.0
    %188 = vmatprep.subr.mxu0 0.0
    %189 = vmatpush1.msra.mxu0 0.0
    %190 = vmatprep.subr.mxu0 0.0
    %191 = vmatpush1.msra.mxu0 0.0
    %192 = vmatprep.subr.mxu0 0.0
    %193 = vmatpush1.msra.mxu0 0.0
    %194 = vmatprep.subr.mxu0 0.0
    %195 = vmatpush1.msra.mxu0 0.0
    %196 = vmatprep.subr.mxu0 0.0
    %197 = vmatpush1.msra.mxu0 0.0
    %198 = vmatprep.subr.mxu0 0.0
    %199 = vmatpush1.msra.mxu0 0.0
    %200 = vmatprep.subr.mxu0 0.0
    %201 = vmatpush1.msra.mxu0 0.0
    %202 = vmatprep.subr.mxu0 0.0
    %203 = vmatpush1.msra.mxu0 0.0
    %204 = vmatprep.subr.mxu0 0.0
    %205 = vmatpush1.msra.mxu0 0.0
    %206 = vmatprep.subr.mxu0 0.0
    %207 = vmatpush1.msra.mxu0 0.0
    %208 = vmatprep.subr.mxu0 0.0
    %209 = vmatpush1.msra.mxu0 0.0
    %210 = vmatprep.subr.mxu0 0.0
    %211 = vmatpush1.msra.mxu0 0.0
    %212 = vmatprep.subr.mxu0 0.0
    %213 = vmatpush1.msra.mxu0 0.0
    %214 = vmatprep.subr.mxu0 0.0
    %215 = vmatpush1.msra.mxu0 0.0
    %216 = vmatprep.mubr.f32.mxu0 0.0
    %217 = vmatmul.mubr.f32.gmra.mrb[0].mxu0 %v150
    %v218 = vpop.f32.mrb[0].mxu0
    %v219 = vadd.f32 %v146, %v218
    %v220 = vpop.f32.mrb[0].mxu0
    %221 = vdwg.mxu0
    %v222 = vmax.f32 %v219, 0.0
    %v223 = vld [vmem:[%s7] sm:$0xff]
    %v224 = vld [vmem:[%s7 + $0x8] sm:$0xff]
    %v225 = vld [vmem:[%s7 + $0x10] sm:$0xff]
    %v226 = vld [vmem:[%s7 + $0x18] sm:$0xff]
    %v227 = vld [vmem:[%s7 + $0x20] sm:$0xff]
    %v228 = vld [vmem:[%s7 + $0x28] sm:$0xff]
    %v229 = vld [vmem:[%s7 + $0x30] sm:$0xff]
    %v230 = vld [vmem:[%s7 + $0x38] sm:$0xff]
    %v231 = vld [vmem:[%s8] sm:$0x1]
    %v233 = vlaneseq
    %v234 = vshrl.u32 %v233, 7
    %v235 = vsub.s32 0, %v234
    %v236 = vrot.slane %v231, %v235
    %v239 = vsel %vm148, %v222, 0
    %241 = vmatprep.subr.mxu0 0.0
    %242 = vmatpush1.msra.mxu0 %v223
    %243 = vmatprep.subr.mxu0 0.0
    %244 = vmatpush1.msra.mxu0 %v224
    %245 = vmatprep.subr.mxu0 0.0
    %246 = vmatpush1.msra.mxu0 %v225
    %247 = vmatprep.subr.mxu0 0.0
    %248 = vmatpush1.msra.mxu0 %v226
    %249 = vmatprep.subr.mxu0 0.0
    %250 = vmatpush1.msra.mxu0 %v227
    %251 = vmatprep.subr.mxu0 0.0
    %252 = vmatpush1.msra.mxu0 %v228
    %253 = vmatprep.subr.mxu0 0.0
    %254 = vmatpush1.msra.mxu0 %v229
    %255 = vmatprep.subr.mxu0 0.0
    %256 = vmatpush1.msra.mxu0 %v230
    %257 = vmatprep.subr.mxu0 0.0
    %258 = vmatpush1.msra.mxu0 0.0
    %259 = vmatprep.subr.mxu0 0.0
    %260 = vmatpush1.msra.mxu0 0.0
    %261 = vmatprep.subr.mxu0 0.0
    %262 = vmatpush1.msra.mxu0 0.0
    %263 = vmatprep.subr.mxu0 0.0
    %264 = vmatpush1.msra.mxu0 0.0
    %265 = vmatprep.subr.mxu0 0.0
    %266 = vmatpush1.msra.mxu0 0.0
    %267 = vmatprep.subr.mxu0 0.0
    %268 = vmatpush1.msra.mxu0 0.0
    %269 = vmatprep.subr.mxu0 0.0
    %270 = vmatpush1.msra.mxu0 0.0
    %271 = vmatprep.subr.mxu0 0.0
    %272 = vmatpush1.msra.mxu0 0.0
    %273 = vmatprep.subr.mxu0 0.0
    %274 = vmatpush1.msra.mxu0 0.0
    %275 = vmatprep.subr.mxu0 0.0
    %276 = vmatpush1.msra.mxu0 0.0
    %277 = vmatprep.subr.mxu0 0.0
    %278 = vmatpush1.msra.mxu0 0.0
    %279 = vmatprep.subr.mxu0 0.0
    %280 = vmatpush1.msra.mxu0 0.0
    %281 = vmatprep.subr.mxu0 0.0
    %282 = vmatpush1.msra.mxu0 0.0
    %283 = vmatprep.subr.mxu0 0.0
    %284 = vmatpush1.msra.mxu0 0.0
    %285 = vmatprep.subr.mxu0 0.0
    %286 = vmatpush1.msra.mxu0 0.0
    %287 = vmatprep.subr.mxu0 0.0
    %288 = vmatpush1.msra.mxu0 0.0
    %289 = vmatprep.subr.mxu0 0.0
    %290 = vmatpush1.msra.mxu0 0.0
    %291 = vmatprep.subr.mxu0 0.0
    %292 = vmatpush1.msra.mxu0 0.0
    %293 = vmatprep.subr.mxu0 0.0
    %294 = vmatpush1.msra.mxu0 0.0
    %295 = vmatprep.subr.mxu0 0.0
    %296 = vmatpush1.msra.mxu0 0.0
    %297 = vmatprep.subr.mxu0 0.0
    %298 = vmatpush1.msra.mxu0 0.0
    %299 = vmatprep.subr.mxu0 0.0
    %300 = vmatpush1.msra.mxu0 0.0
    %301 = vmatprep.subr.mxu0 0.0
    %302 = vmatpush1.msra.mxu0 0.0
    %303 = vmatprep.subr.mxu0 0.0
    %304 = vmatpush1.msra.mxu0 0.0
    %305 = vmatprep.mubr.f32.mxu0 0.0
    %306 = vmatmul.mubr.f32.gmra.mrb[0].mxu0 %v239
    %v307 = vpop.f32.mrb[0].mxu0
    %v308 = vadd.f32 %v236, %v307
    %v309 = vpop.f32.mrb[0].mxu0
    %310 = vdwg.mxu0
    %311 = vst.msk [vmem:[#allocation2] sm:$0xff] %vm50, %v308
    // Predicated region
    $region38: #{diffusion_mlp_v3_forward.1} parent=1 // pred_check
      _
    $region39: #{diffusion_mlp_v3_forward.1} parent=1 // pred_check_branch
      %313 = sbr.rel (0) target = $region41
    $region40: #{diffusion_mlp_v3_forward.1} parent=1 // pred_region
      %s315 = ssub.s32 128, 128
      %316 = vsyncadd [#allocation3], %s315
      %s318 = sshll.u32 [#allocation2], 4
      %s319 = int_to_ptr.vmem [resolvable:$true] %s318
      %321 = dma.vmem_to_hbm [thread:$0]  %s319, 128, %s9, [#allocation3]
    $region41: #{diffusion_mlp_v3_forward.1} parent=1 // pred_fallthru
      _
    // Predicated region
    $region42: #{diffusion_mlp_v3_forward.1} parent=1 // pred_check
      _
    $region43: #{diffusion_mlp_v3_forward.1} parent=1 // pred_check_branch
      %323 = sbr.rel (0) target = $region45
    $region44: #{diffusion_mlp_v3_forward.1} parent=1 // pred_region
      %324 = dma.done [#allocation3], 128
    $region45: #{diffusion_mlp_v3_forward.1} parent=1 // pred_fallthru
      _
    %325 = vsyncpa [#allocation3], 1

</llo_original>
